<compile_context>
chip_gen: v6e
topology: v6e:2x2x1
jax: 0.10.0
libtpu: 0.0.40
codegen_flags: <defaults>
</compile_context>

<pallas_src>
import functools

import jax
import jax.numpy as jnp
from jax.experimental import pallas as pl
from jax.experimental.pallas import tpu as pltpu


def _round_up(x, m):
    return ((x + m - 1) // m) * m


def grnn_kernel(xt_ref, ws_ref, bias_ref, coef_ref, o_ref, *, mm_dtype):
    xt = xt_ref[...]                      # (D, T)  batch on lanes, f32
    ws = ws_ref[...]                      # (D, D)  = W.T / sigma^2
    bias = bias_ref[...]                  # (D, 1)  = -||W[:, m]||^2 / (2 sigma^2)
    coef = coef_ref[...]                  # (8, D)  row0 = W.sum(axis=1), row1 = 1

    # e[m, n] = (2*(x@W)[n, m] - ||W[:, m]||^2) / (2 sigma^2)
    #         = -d2[n, m] / (2 sigma^2) + ||x_n||^2 / (2 sigma^2)
    # The ||x_n||^2 term cancels in the final ratio, so it is never computed.
    xw = jnp.dot(ws.astype(mm_dtype), xt.astype(mm_dtype),
                 preferred_element_type=jnp.float32)             # (D, T)  MXU
    e = xw + bias                                                 # (D, T)  VPU

    # Per-sample max over centers (one XLU sublane reduce).  Subtracting it
    # also cancels in numer/denom and guarantees denom >= 1 (no underflow).
    e_max = jnp.max(e, axis=0, keepdims=True)                     # (1, T)  XLU
    bf = jnp.exp(e - e_max)                                       # (D, T)  EUP

    # One MXU op gives numerator (row 0) and denominator (row 1) together:
    #   sum_j (bf @ W)[n, j] == bf @ W.sum(axis=1)
    nd = jnp.dot(coef, bf, preferred_element_type=jnp.float32)    # (8, T)  MXU
    numer = nd[0:1, :]                                            # (1, T) lane-dense
    denom = nd[1:2, :]                                            # (1, T) lane-dense

    # EUP approx reciprocal + one Newton refinement (~f32 accuracy; denom >= 1).
    r = pl.reciprocal(denom, approx=True)
    r = r * (2.0 - denom * r)

    # Lane-dense (1, T) store; wrapper reshapes back to (N, 1).
    o_ref[...] = numer * r


def grnn_precompute(w, sigma=1.0):
    """W-derived constants.  Cache the result when W is static (inference)."""
    w = w.astype(jnp.float32)
    d = w.shape[0]
    inv_s2 = 1.0 / (float(sigma) * float(sigma))
    ws = w.T * inv_s2                                             # (D, D)
    c_sq = jnp.sum(w * w, axis=0, keepdims=True)                  # (1, D) ||W[:,m]||^2
    bias = (-0.5 * inv_s2) * c_sq.T                               # (D, 1)
    coef = jnp.zeros((8, d), jnp.float32)
    coef = coef.at[0, :].set(jnp.sum(w, axis=1))                  # W row-sums
    coef = coef.at[1, :].set(1.0)                                 # ones (denominator)
    return ws, bias, coef


def _select_tile_n(n, d):
    """Batch-tile width (lane axis) for the (D, tile_n) x^T blocks."""
    if n <= 256:
        return n                         # single block; block dims == full dims
    # ~2 MiB of x per tile amortises the ~0.35 us per-grid-step overhead.
    tile = (2 * 1024 * 1024) // (4 * d)
    tile = max(tile, 512)
    # >= 2 grid steps so the "parallel" axis shards over v7x's two TensorCores
    # (no-op on single-TC v5e/v6e).
    tile = min(tile, _round_up(-(-n // 2), 128))
    # VMEM cap: keep the double-buffered x^T tile under ~8 MiB even for big D.
    tile = min(tile, max(128, ((8 * 1024 * 1024) // (8 * d)) // 128 * 128))
    # Lane-dense blocks: multiple of 128 (ragged last block is padded/masked).
    tile = max(128, (tile // 128) * 128)
    return tile


def grnn_forward(x, w, sigma=1.0):
    n, d = x.shape
    assert w.shape == (d, d)
    x = x.astype(jnp.float32)

    # NOTE: cache these three arrays across calls when W is static (inference).
    ws, bias, coef = grnn_precompute(w, sigma)

    tile_n = _select_tile_n(n, d)
    grid = (pl.cdiv(n, tile_n),)

    # bf16 MXU pass for the D^2 matmul when D is large (irrelevant / skipped at
    # small D where the kernel is overhead- or memory-bound, keeps f32 there).
    mm_dtype = jnp.bfloat16 if d >= 256 else jnp.float32
    kernel = functools.partial(grnn_kernel, mm_dtype=mm_dtype)

    # Explicit VMEM budget: 2x x^T tile + 2x out tile + resident constants
    # (conservatively assumed double-buffered) + padded (D, T) temporaries.
    d8 = _round_up(d, 8)
    t128 = _round_up(tile_n, 128)
    est = (2 * 4 * d * tile_n                      # x^T double buffer
           + 2 * 4 * tile_n                        # (1, T) out double buffer
           + 2 * 4 * (d * d + d + 8 * d)           # W^T/sigma^2, bias, coef
           + 6 * 4 * d8 * t128)                    # xw, e, bf, nd, ... temps
    vmem_limit = int(min(max(2 * est, 32 * 2 ** 20), 64 * 2 ** 20))
    # TODO(synk): for very large D on v7x (64 MiB VMEM), tile the centers axis
    # with an extra "arbitrary" grid dim + VMEM accumulator instead of holding
    # all of W resident.

    cost = pl.CostEstimate(
        flops=2 * n * d * d + 2 * n * 8 * d + 4 * n * d,
        transcendentals=n * d + n,
        bytes_accessed=4 * (n * d + d * d + d + 8 * d + n),
    )

    out_row = pl.pallas_call(
        kernel,
        out_shape=jax.ShapeDtypeStruct((1, n), jnp.float32),
        grid=grid,
        in_specs=[
            pl.BlockSpec((d, tile_n), lambda i: (0, i)),   # x^T tile (pipelined)
            pl.BlockSpec((d, d), lambda i: (0, 0)),        # W^T / sigma^2 (resident)
            pl.BlockSpec((d, 1), lambda i: (0, 0)),        # bias (resident)
            pl.BlockSpec((8, d), lambda i: (0, 0)),        # coef slab (resident)
        ],
        out_specs=pl.BlockSpec((1, tile_n), lambda i: (0, i)),
        compiler_params=pltpu.CompilerParams(
            dimension_semantics=("parallel",),
            vmem_limit_bytes=vmem_limit,
        ),
        cost_estimate=cost,
    )(x.T, ws, bias, coef)

    return out_row.reshape(n, 1)


def grnn_reference(x, w, sigma=1.0):
    # Pure-JAX reference mirroring the PyTorch code directly.
    centers = w.T                                                  # rows of W.t()
    diff = x[:, None, :] - centers[None, :, :]                     # (N, D, D)
    d2 = jnp.sum(diff * diff, axis=-1)                             # (N, D)
    bf = jnp.exp(-d2 / (2.0 * sigma ** 2))
    summ = jnp.sum(bf, axis=1, keepdims=True)
    return jnp.sum(bf @ w, axis=1, keepdims=True) / summ


if __name__ == "__main__":
    input_size = 16   # D
    batch = 8         # N
    sigma = 1.0

    key = jax.random.PRNGKey(0)
    k_x, k_w = jax.random.split(key)

    # Deterministic "nn.Linear(input_size, input_size, bias=False)"-style init:
    # uniform(-1/sqrt(in_features), 1/sqrt(in_features)).
    bound = 1.0 / (input_size ** 0.5)
    w = jax.random.uniform(
        k_w, (input_size, input_size), minval=-bound, maxval=bound, dtype=jnp.float32
    )
    x = jax.random.normal(k_x, (batch, input_size), dtype=jnp.float32)

    out = grnn_forward(x, w, sigma=sigma)
    out = jax.block_until_ready(out)

    ref = grnn_reference(x, w, sigma=sigma)
    assert out.shape == (batch, 1)
    assert jnp.allclose(out, ref, atol=1e-4, rtol=5e-4), (out, ref)

    print("KERNEL_OK")
</pallas_src>

<mosaic_0001>
module attributes {stable_mosaic.version = 11 : i64} {
  func.func @grnn_kernel(%arg0: i32, %arg1: memref<16x8xf32, #tpu.memory_space<vmem>>, %arg2: memref<16x16xf32, #tpu.memory_space<vmem>>, %arg3: memref<16x1xf32, #tpu.memory_space<vmem>>, %arg4: memref<8x16xf32, #tpu.memory_space<vmem>>, %arg5: memref<1x8xf32, #tpu.memory_space<vmem>>) attributes {dimension_semantics = [#tpu.dimension_semantics<parallel>], iteration_bounds = array<i64: 1>, scalar_prefetch = 0 : i64, scratch_operands = 0 : i64, tpu.core_type = #tpu.core_type<tc>, window_params = [{transform_indices = @transform_0, window_bounds = array<i64: 16, 8>}, {pipeline_mode = #tpu.pipeline_mode<synchronous>, transform_indices = @transform_1, window_bounds = array<i64: 16, 16>}, {pipeline_mode = #tpu.pipeline_mode<synchronous>, transform_indices = @transform_2, window_bounds = array<i64: 16, 1>}, {pipeline_mode = #tpu.pipeline_mode<synchronous>, transform_indices = @transform_3, window_bounds = array<i64: 8, 16>}, {transform_indices = @transform_4, window_bounds = array<i64: 1, 8>}]} {
    %c0 = arith.constant 0 : index
    %c0_0 = arith.constant 0 : index
    %0 = vector.load %arg1[%c0, %c0_0] : memref<16x8xf32, #tpu.memory_space<vmem>>, vector<16x8xf32>
    %c0_1 = arith.constant 0 : index
    %c0_2 = arith.constant 0 : index
    %1 = vector.load %arg2[%c0_1, %c0_2] : memref<16x16xf32, #tpu.memory_space<vmem>>, vector<16x16xf32>
    %c0_3 = arith.constant 0 : index
    %c0_4 = arith.constant 0 : index
    %2 = vector.load %arg3[%c0_3, %c0_4] : memref<16x1xf32, #tpu.memory_space<vmem>>, vector<16x1xf32>
    %c0_5 = arith.constant 0 : index
    %c0_6 = arith.constant 0 : index
    %3 = vector.load %arg4[%c0_5, %c0_6] : memref<8x16xf32, #tpu.memory_space<vmem>>, vector<8x16xf32>
    %cst = arith.constant dense<0.000000e+00> : vector<16x8xf32>
    %4 = tpu.matmul %1, %0, %cst {dimension_numbers = #tpu.dot_dimension_numbers<[1], [0], [0], [1], [0, 0, 1, 1], [], []>} : vector<16x16xf32>, vector<16x8xf32>, vector<16x8xf32> -> vector<16x8xf32>
    %5 = vector.broadcast %2 : vector<16x1xf32> to vector<16x8xf32>
    %6 = arith.addf %4, %5 : vector<16x8xf32>
    %cst_7 = arith.constant dense<0xFF800000> : vector<8xf32>
    %7 = vector.multi_reduction <maximumf>, %6, %cst_7 [0] : vector<16x8xf32> to vector<8xf32>
    %8 = vector.shape_cast %7 : vector<8xf32> to vector<1x8xf32>
    %9 = vector.broadcast %8 : vector<1x8xf32> to vector<16x8xf32>
    %10 = arith.subf %6, %9 : vector<16x8xf32>
    %11 = math.exp %10 : vector<16x8xf32>
    %cst_8 = arith.constant dense<0.000000e+00> : vector<8x8xf32>
    %12 = tpu.matmul %3, %11, %cst_8 {dimension_numbers = #tpu.dot_dimension_numbers<[1], [0], [0], [1], [0, 0, 1, 1], [], []>} : vector<8x16xf32>, vector<16x8xf32>, vector<8x8xf32> -> vector<8x8xf32>
    %13 = vector.extract_strided_slice %12 {offsets = [0, 0], sizes = [1, 8], strides = [1, 1]} : vector<8x8xf32> to vector<1x8xf32>
    %14 = vector.extract_strided_slice %12 {offsets = [1, 0], sizes = [1, 8], strides = [1, 1]} : vector<8x8xf32> to vector<1x8xf32>
    %15 = tpu.reciprocal %14 {approx = true} : vector<1x8xf32> -> vector<1x8xf32>
    %16 = arith.mulf %14, %15 : vector<1x8xf32>
    %cst_9 = arith.constant 2.000000e+00 : f32
    %17 = vector.broadcast %cst_9 : f32 to vector<1x8xf32>
    %18 = arith.subf %17, %16 : vector<1x8xf32>
    %19 = arith.mulf %15, %18 : vector<1x8xf32>
    %20 = arith.mulf %13, %19 : vector<1x8xf32>
    %c0_10 = arith.constant 0 : index
    %c0_11 = arith.constant 0 : index
    %21 = vector.load %arg5[%c0_10, %c0_11] : memref<1x8xf32, #tpu.memory_space<vmem>>, vector<1x8xf32>
    tpu.vector_store %arg5[%c0_10, %c0_11], %20 {strides = array<i32>} : memref<1x8xf32, #tpu.memory_space<vmem>>, vector<1x8xf32>,
    return
  }
  func.func @transform_0(%arg0: i32) -> (i32, i32) {
    %c0_i32 = arith.constant 0 : i32
    %c0_i32_0 = arith.constant 0 : i32
    return %c0_i32, %arg0 : i32, i32
  }
  func.func @transform_1(%arg0: i32) -> (i32, i32) {
    %c0_i32 = arith.constant 0 : i32
    %c0_i32_0 = arith.constant 0 : i32
    %c0_i32_1 = arith.constant 0 : i32
    return %c0_i32, %c0_i32_0 : i32, i32
  }
  func.func @transform_2(%arg0: i32) -> (i32, i32) {
    %c0_i32 = arith.constant 0 : i32
    %c0_i32_0 = arith.constant 0 : i32
    %c0_i32_1 = arith.constant 0 : i32
    return %c0_i32, %c0_i32_0 : i32, i32
  }
  func.func @transform_3(%arg0: i32) -> (i32, i32) {
    %c0_i32 = arith.constant 0 : i32
    %c0_i32_0 = arith.constant 0 : i32
    %c0_i32_1 = arith.constant 0 : i32
    return %c0_i32, %c0_i32_0 : i32, i32
  }
  func.func @transform_4(%arg0: i32) -> (i32, i32) {
    %c0_i32 = arith.constant 0 : i32
    %c0_i32_0 = arith.constant 0 : i32
    return %c0_i32, %arg0 : i32, i32
  }
}

</mosaic_0001>

<llo_original>
// kernel: tpu_custom_call.1
$region0: #{tpu_custom_call.1}
  #allocation0 [shape = 'u32[]', space=smem, size = 0x4, offset = 0x4, fixed_abs, tag = 'smem constant byte address 0x4 - core index']
  #allocation1 [shape = 'u32[144,128]{1,0:T(1,128)}', space=vmem, size = 0x12000, scoped, tag = 'internal scratch']
  %s0 = inlined_call_operand.vmem [shape: f32[16,8], index: 0, kind: input, shape index: {}]
  %s1 = inlined_call_operand.vmem [shape: f32[16,16], index: 1, kind: input, shape index: {}]
  %s2 = inlined_call_operand.vmem [shape: f32[16,1], index: 2, kind: input, shape index: {}]
  %s3 = inlined_call_operand.vmem [shape: f32[8,16], index: 3, kind: input, shape index: {}]
  %s4 = inlined_call_operand.hbm [shape: f32[1,8], index: 4, kind: output, shape index: {}]
  %s5 = sld [smem:[#allocation0]]
  $region26: #{tpu_custom_call.1} parent=0
    _
  %s7 = ssub.s32 1, %s5
  %s8 = scalar_select 0, %s7, %s5
  $region1: #{tpu_custom_call.1} parent=0
    #allocation2 [shape = 'u8[512]{0}', space=vmem, size = 0x400, scoped, tag = 'output window, operand 0, single buffered']
    #allocation3 [shape = 's32[1]{0}', space=sflag, size = 0x4, scoped, tag = 'scoped memory for tpu_custom_call.1']
    %9 = vsyncpa [#allocation3], 0
    // Predicated region
    $region2: #{tpu_custom_call.1} parent=1 // pred_check
      _
    $region3: #{tpu_custom_call.1} parent=1 // pred_check_branch
      %11 = sbr.rel (0) target = $region5
    $region4: #{tpu_custom_call.1} parent=1 // pred_region
      _
    $region5: #{tpu_custom_call.1} parent=1 // pred_fallthru
      _
    // Predicated region
    $region6: #{tpu_custom_call.1} parent=1 // pred_check
      _
    $region7: #{tpu_custom_call.1} parent=1 // pred_check_branch
      %13 = sbr.rel (0) target = $region9
    $region8: #{tpu_custom_call.1} parent=1 // pred_region
      _
    $region9: #{tpu_custom_call.1} parent=1 // pred_fallthru
      _
    // Predicated region
    $region10: #{tpu_custom_call.1} parent=1 // pred_check
      _
    $region11: #{tpu_custom_call.1} parent=1 // pred_check_branch
      %15 = sbr.rel (0) target = $region13
    $region12: #{tpu_custom_call.1} parent=1 // pred_region
      _
    $region13: #{tpu_custom_call.1} parent=1 // pred_fallthru
      _
    // Predicated region
    $region14: #{tpu_custom_call.1} parent=1 // pred_check
      _
    $region15: #{tpu_custom_call.1} parent=1 // pred_check_branch
      %17 = sbr.rel (0) target = $region17
    $region16: #{tpu_custom_call.1} parent=1 // pred_region
      _
    $region17: #{tpu_custom_call.1} parent=1 // pred_fallthru
      _
    %v18 = vld [vmem:[%s0] sm:$0xff]
    %v19 = vld [vmem:[%s0 + $0x8] sm:$0xff]
    %v20 = vld [vmem:[%s1] sm:$0xff]
    %v21 = vld [vmem:[%s1 + $0x8] sm:$0xff]
    %v22 = vld [vmem:[%s2] sm:$0xff]
    %v23 = vld [vmem:[%s2 + $0x8] sm:$0xff]
    %v24 = vld [vmem:[%s3] sm:$0xff]
    %26 = vset.pattern.permute.xlu0 0
    %27 = vperm.xlu0 %26, %v22
    %v28 = vpop.permute.xlu0 %27
    %31 = vset.pattern.permute.xlu0 0
    %32 = vperm.xlu0 %31, %v23
    %v33 = vpop.permute.xlu0 %32
    %vm35 = vcmask 130048
    %v37 = vsel %vm35, %v20, 0
    %v40 = vsel %vm35, %v21, 0
    %42 = vmatprep.subr.mxu0 0.0
    %43 = vmatpush1.msra.mxu0 0.0
    %44 = vmatprep.subr.mxu0 0.0
    %45 = vmatpush1.msra.mxu0 0.0
    %46 = vmatprep.subr.mxu0 0.0
    %47 = vmatpush1.msra.mxu0 0.0
    %48 = vmatprep.subr.mxu0 0.0
    %49 = vmatpush1.msra.mxu0 0.0
    %50 = vmatprep.subr.mxu0 0.0
    %51 = vmatpush1.msra.mxu0 0.0
    %52 = vmatprep.subr.mxu0 0.0
    %53 = vmatpush1.msra.mxu0 0.0
    %54 = vmatprep.subr.mxu0 0.0
    %55 = vmatpush1.msra.mxu0 0.0
    %56 = vmatprep.subr.mxu0 0.0
    %57 = vmatpush1.msra.mxu0 0.0
    %58 = vmatprep.subr.mxu0 0.0
    %59 = vmatpush1.msra.mxu0 0.0
    %60 = vmatprep.subr.mxu0 0.0
    %61 = vmatpush1.msra.mxu0 0.0
    %62 = vmatprep.subr.mxu0 0.0
    %63 = vmatpush1.msra.mxu0 0.0
    %64 = vmatprep.subr.mxu0 0.0
    %65 = vmatpush1.msra.mxu0 0.0
    %66 = vmatprep.subr.mxu0 0.0
    %67 = vmatpush1.msra.mxu0 0.0
    %68 = vmatprep.subr.mxu0 0.0
    %69 = vmatpush1.msra.mxu0 0.0
    %70 = vmatprep.subr.mxu0 0.0
    %71 = vmatpush1.msra.mxu0 %v19
    %72 = vmatprep.subr.mxu0 0.0
    %73 = vmatpush1.msra.mxu0 %v18
    %74 = vmatprep.subr.mxu0 0.0
    %75 = vmatpush2.msra.mxu0 0.0
    %76 = vmatprep.subr.mxu0 0.0
    %77 = vmatpush2.msra.mxu0 0.0
    %78 = vmatprep.subr.mxu0 0.0
    %79 = vmatpush2.msra.mxu0 0.0
    %80 = vmatprep.subr.mxu0 0.0
    %81 = vmatpush2.msra.mxu0 0.0
    %82 = vmatprep.subr.mxu0 0.0
    %83 = vmatpush2.msra.mxu0 0.0
    %84 = vmatprep.subr.mxu0 0.0
    %85 = vmatpush2.msra.mxu0 0.0
    %86 = vmatprep.subr.mxu0 0.0
    %87 = vmatpush2.msra.mxu0 0.0
    %88 = vmatprep.subr.mxu0 0.0
    %89 = vmatpush2.msra.mxu0 0.0
    %90 = vmatprep.subr.mxu0 0.0
    %91 = vmatpush2.msra.mxu0 0.0
    %92 = vmatprep.subr.mxu0 0.0
    %93 = vmatpush2.msra.mxu0 0.0
    %94 = vmatprep.subr.mxu0 0.0
    %95 = vmatpush2.msra.mxu0 0.0
    %96 = vmatprep.subr.mxu0 0.0
    %97 = vmatpush2.msra.mxu0 0.0
    %98 = vmatprep.subr.mxu0 0.0
    %99 = vmatpush2.msra.mxu0 0.0
    %100 = vmatprep.subr.mxu0 0.0
    %101 = vmatpush2.msra.mxu0 0.0
    %102 = vmatprep.subr.mxu0 0.0
    %103 = vmatpush2.msra.mxu0 0.0
    %104 = vmatprep.subr.mxu0 0.0
    %105 = vmatpush2.msra.mxu0 0.0
    %106 = vmatprep.mubr.f32.mxu0 0.0
    %107 = vmatmul.mubr.f32.gmra.mxu0 %v37
    %v108 = vpop.f32.mrf.mxu0
    %v109 = vadd.f32 %v28, %v108
    %v110 = vpop.f32.mrf.mxu0
    %111 = vmatprep.mubr.f32.mxu0 0.0
    %112 = vmatmul.mubr.f32.gmra.mxu0 %v40
    %v113 = vpop.f32.mrf.mxu0
    %v114 = vadd.f32 %v33, %v113
    %v115 = vpop.f32.mrf.mxu0
    %116 = vdwg.mxu0
    %vm117 = vcmask 64512
    %v118 = vsel %vm117, %v109, -inf
    %v119 = vsel %vm117, %v114, -inf
    %v120 = vmax.f32 %v118, %v119
    %v121 = vrot.slane %v120, 4
    %v122 = vmax.f32 %v120, %v121
    %v123 = vrot.slane %v122, 2
    %v124 = vmax.f32 %v122, %v123
    %v125 = vrot.slane %v124, 1
    %v126 = vmax.f32 %v124, %v125
    %v127 = vsub.f32 %v109, %v126
    %v128 = vsub.f32 %v114, %v126
    %v129 = vmul.f32 %v127, 1.442695
    %v130 = vpow.pop %v129
    %v131 = vmul.f32 %v128, 1.442695
    %v132 = vpow.pop %v131
    %v134 = vsel %vm35, %v24, 0
    %136 = vmatprep.subr.mxu0 0.0
    %137 = vmatpush1.msra.mxu0 0.0
    %138 = vmatprep.subr.mxu0 0.0
    %139 = vmatpush1.msra.mxu0 0.0
    %140 = vmatprep.subr.mxu0 0.0
    %141 = vmatpush1.msra.mxu0 0.0
    %142 = vmatprep.subr.mxu0 0.0
    %143 = vmatpush1.msra.mxu0 0.0
    %144 = vmatprep.subr.mxu0 0.0
    %145 = vmatpush1.msra.mxu0 0.0
    %146 = vmatprep.subr.mxu0 0.0
    %147 = vmatpush1.msra.mxu0 0.0
    %148 = vmatprep.subr.mxu0 0.0
    %149 = vmatpush1.msra.mxu0 0.0
    %150 = vmatprep.subr.mxu0 0.0
    %151 = vmatpush1.msra.mxu0 0.0
    %152 = vmatprep.subr.mxu0 0.0
    %153 = vmatpush1.msra.mxu0 0.0
    %154 = vmatprep.subr.mxu0 0.0
    %155 = vmatpush1.msra.mxu0 0.0
    %156 = vmatprep.subr.mxu0 0.0
    %157 = vmatpush1.msra.mxu0 0.0
    %158 = vmatprep.subr.mxu0 0.0
    %159 = vmatpush1.msra.mxu0 0.0
    %160 = vmatprep.subr.mxu0 0.0
    %161 = vmatpush1.msra.mxu0 0.0
    %162 = vmatprep.subr.mxu0 0.0
    %163 = vmatpush1.msra.mxu0 0.0
    %164 = vmatprep.subr.mxu0 0.0
    %165 = vmatpush1.msra.mxu0 %v132
    %166 = vmatprep.subr.mxu0 0.0
    %167 = vmatpush1.msra.mxu0 %v130
    %168 = vmatprep.subr.mxu0 0.0
    %169 = vmatpush2.msra.mxu0 0.0
    %170 = vmatprep.subr.mxu0 0.0
    %171 = vmatpush2.msra.mxu0 0.0
    %172 = vmatprep.subr.mxu0 0.0
    %173 = vmatpush2.msra.mxu0 0.0
    %174 = vmatprep.subr.mxu0 0.0
    %175 = vmatpush2.msra.mxu0 0.0
    %176 = vmatprep.subr.mxu0 0.0
    %177 = vmatpush2.msra.mxu0 0.0
    %178 = vmatprep.subr.mxu0 0.0
    %179 = vmatpush2.msra.mxu0 0.0
    %180 = vmatprep.subr.mxu0 0.0
    %181 = vmatpush2.msra.mxu0 0.0
    %182 = vmatprep.subr.mxu0 0.0
    %183 = vmatpush2.msra.mxu0 0.0
    %184 = vmatprep.subr.mxu0 0.0
    %185 = vmatpush2.msra.mxu0 0.0
    %186 = vmatprep.subr.mxu0 0.0
    %187 = vmatpush2.msra.mxu0 0.0
    %188 = vmatprep.subr.mxu0 0.0
    %189 = vmatpush2.msra.mxu0 0.0
    %190 = vmatprep.subr.mxu0 0.0
    %191 = vmatpush2.msra.mxu0 0.0
    %192 = vmatprep.subr.mxu0 0.0
    %193 = vmatpush2.msra.mxu0 0.0
    %194 = vmatprep.subr.mxu0 0.0
    %195 = vmatpush2.msra.mxu0 0.0
    %196 = vmatprep.subr.mxu0 0.0
    %197 = vmatpush2.msra.mxu0 0.0
    %198 = vmatprep.subr.mxu0 0.0
    %199 = vmatpush2.msra.mxu0 0.0
    %200 = vmatprep.mubr.f32.mxu0 0.0
    %201 = vmatmul.mubr.f32.gmra.mxu0 %v134
    %v202 = vpop.f32.mrf.mxu0
    %v203 = vadd.f32 0.0, %v202
    %v204 = vpop.f32.mrf.mxu0
    %205 = vdwg.mxu0
    %v206 = vrcp.pop %v203
    %v207 = vmul.f32 %v203, %v206
    %v208 = vsub.f32 2.0, %v207
    %v209 = vmul.f32 %v206, %v208
    %v211 = vrot.slane %v209, 1
    %v213 = vmul.f32 %v203, %v211
    %vm214 = vcmask 57344
    %215 = vst.msk [vmem:[#allocation2] sm:$0x1] %vm214, %v213
    // Predicated region
    $region18: #{tpu_custom_call.1} parent=1 // pred_check
      _
    $region19: #{tpu_custom_call.1} parent=1 // pred_check_branch
      %217 = sbr.rel (0) target = $region21
    $region20: #{tpu_custom_call.1} parent=1 // pred_region
      %s219 = ssub.s32 16, 16
      %220 = vsyncadd [#allocation3], %s219
      %s222 = sshll.u32 [#allocation2], 4
      %s223 = int_to_ptr.vmem [resolvable:$true] %s222
      %225 = dma.vmem_to_hbm [thread:$0]  %s223, 16, %s4, [#allocation3]
    $region21: #{tpu_custom_call.1} parent=1 // pred_fallthru
      _
    // Predicated region
    $region22: #{tpu_custom_call.1} parent=1 // pred_check
      _
    $region23: #{tpu_custom_call.1} parent=1 // pred_check_branch
      %227 = sbr.rel (0) target = $region25
    $region24: #{tpu_custom_call.1} parent=1 // pred_region
      %228 = dma.done [#allocation3], 16
    $region25: #{tpu_custom_call.1} parent=1 // pred_fallthru
      _
    %229 = vsyncpa [#allocation3], 1

</llo_original>
